<compile_context>
chip_gen: v5e
topology: v5e:2x2
jax: 0.10.0
libtpu: 0.0.40
codegen_flags: <defaults>
</compile_context>

<pallas_src>
import jax
import jax.numpy as jnp
from jax.experimental import pallas as pl
from jax.experimental.pallas import tpu as pltpu


def _round_up(x, m):
    return ((x + m - 1) // m) * m


def _auto_block_b(B):
    # ~8 grid steps, lane-aligned, capped so VMEM stays small on every gen.
    return max(128, min(_round_up(pl.cdiv(B, 8), 128), 8192))


def _discriminator_kernel(xt_ref, at_ref, w1x_ref, w1a_ref, b1_ref, w2_ref,
                          b2_ref, o_ref):
    # xt_ref : (state_dim, TB)   batch on lanes (features-major)
    # at_ref : (action_dim, TB)
    # w1x_ref: (hidden, state_dim)   == fc1.weight[:, :state_dim]
    # w1a_ref: (hidden, action_dim)  == fc1.weight[:, state_dim:]
    # b1_ref : (hidden, 1)           == fc1.bias
    # w2_ref : (1, hidden)           == fc2.weight
    # b2_ref : (1, 1)                == fc2.bias (SMEM scalar)
    # o_ref  : (1, TB)               lane-dense output row
    h = jnp.dot(w1x_ref[...], xt_ref[...].astype(jnp.float32),
                preferred_element_type=jnp.float32)
    h = h + jnp.dot(w1a_ref[...], at_ref[...].astype(jnp.float32),
                    preferred_element_type=jnp.float32)
    h = jnp.maximum(h + b1_ref[...], 0.0)                       # bias + ReLU (VPU)
    logit = jnp.dot(w2_ref[...], h,
                    preferred_element_type=jnp.float32) + b2_ref[0, 0]
    o_ref[...] = jax.nn.sigmoid(logit).astype(o_ref.dtype)      # exp on EUP


def discriminator_forward_features_major(x_t, a_t, params, *, block_b=None):
    """Features-major entry: x_t (state_dim, B), a_t (action_dim, B) -> (B, 1).

    Zero wrapper-side copies: activations are streamed straight from HBM.
    """
    w1_t, b1, w2, b2 = params
    hidden_dim, in1 = w1_t.shape
    state_dim, B = x_t.shape
    action_dim = a_t.shape[0]
    assert state_dim + action_dim == in1
    assert a_t.shape[1] == B

    w1x = w1_t[:, :state_dim]      # (hidden, state_dim) -- tiny, pinned in VMEM
    w1a = w1_t[:, state_dim:]      # (hidden, action_dim)

    if block_b is None:
        block_b = _auto_block_b(B)
    assert block_b % 128 == 0, "batch tile must be lane-aligned (multiple of 128)"

    nb = pl.cdiv(B, block_b)       # ragged last block handled by Pallas

    out = pl.pallas_call(
        _discriminator_kernel,
        out_shape=jax.ShapeDtypeStruct((1, B), jnp.float32),
        grid=(nb,),
        in_specs=[
            # batch streams: tiled along lanes, double-buffered by Pallas
            pl.BlockSpec((state_dim, block_b), lambda i: (0, i)),
            pl.BlockSpec((action_dim, block_b), lambda i: (0, i)),
            # weights / fc1 bias: pinned (same block every step -> VMEM resident)
            pl.BlockSpec((hidden_dim, state_dim), lambda i: (0, 0)),
            pl.BlockSpec((hidden_dim, action_dim), lambda i: (0, 0)),
            pl.BlockSpec((hidden_dim, 1), lambda i: (0, 0)),
            pl.BlockSpec((1, hidden_dim), lambda i: (0, 0)),
            # fc2 bias: scalar in SMEM
            pl.BlockSpec(memory_space=pltpu.MemorySpace.SMEM),
        ],
        out_specs=pl.BlockSpec((1, block_b), lambda i: (0, i)),
        compiler_params=pltpu.CompilerParams(
            dimension_semantics=("parallel",)),   # v7x: shard batch over 2 TCs
    )(x_t, a_t, w1x, w1a, b1, w2, b2)

    return out.reshape(B, 1)


def discriminator_forward(x, a, params, *, block_b=None, min_pallas_batch=1024,
                          stream_dtype=None):
    """PyTorch-layout entry: x (B, state_dim), a (B, action_dim) -> (B, 1)."""
    B = x.shape[0]
    if B < min_pallas_batch:
        # Tiny batches: kernel launch + pipeline prologue dominate; XLA's fused
        # path is faster and avoids the wrapper transposes entirely.
        return discriminator_ref(x, a, params)

    # One transpose per input (XLA fuses each into a single HBM pass); no
    # concatenated array and no padding are ever materialised.
    x_t = x.T
    a_t = a.T
    if stream_dtype is not None:
        x_t = x_t.astype(stream_dtype)
        a_t = a_t.astype(stream_dtype)
    return discriminator_forward_features_major(x_t, a_t, params,
                                                block_b=block_b)


def init_params(key, state_dim, hidden_dim, action_dim):
    """Deterministic init mimicking torch.nn.Linear's uniform(-1/sqrt(fan_in)).

    Layouts match torch directly:
      w1_t: (hidden, state+action) == fc1.weight
      b1  : (hidden, 1)            == fc1.bias
      w2  : (1, hidden)            == fc2.weight
      b2  : (1, 1)                 == fc2.bias
    """
    k1, k2, k3, k4 = jax.random.split(key, 4)
    in1 = state_dim + action_dim
    bound1 = 1.0 / jnp.sqrt(jnp.float32(in1))
    bound2 = 1.0 / jnp.sqrt(jnp.float32(hidden_dim))
    w1_t = jax.random.uniform(k1, (hidden_dim, in1), jnp.float32, -bound1, bound1)
    b1 = jax.random.uniform(k2, (hidden_dim, 1), jnp.float32, -bound1, bound1)
    w2 = jax.random.uniform(k3, (1, hidden_dim), jnp.float32, -bound2, bound2)
    b2 = jax.random.uniform(k4, (1, 1), jnp.float32, -bound2, bound2)
    return (w1_t, b1, w2, b2)


def discriminator_ref(x, a, params):
    """Pure-JAX reference matching the PyTorch forward exactly."""
    w1_t, b1, w2, b2 = params
    cat = jnp.concatenate([x, a], axis=1)
    h = jnp.maximum(cat @ w1_t.T + b1[:, 0], 0.0)
    return jax.nn.sigmoid(h @ w2.T + b2[0, 0])


if __name__ == "__main__":
    # CartPole-v0: state_dim=4, action_dim=2; hidden_dim=128 as in the module.
    state_dim, hidden_dim, action_dim = 4, 128, 2
    batch = 300   # deliberately NOT a multiple of 128: exercises the ragged edge

    key = jax.random.PRNGKey(0)
    kx, ka, kp = jax.random.split(key, 3)
    x = jax.random.normal(kx, (batch, state_dim), jnp.float32)
    # one-hot action vectors (typical GAIL discriminator input for discrete acts)
    a_idx = jax.random.randint(ka, (batch,), 0, action_dim)
    a = jax.nn.one_hot(a_idx, action_dim, dtype=jnp.float32)

    params = init_params(kp, state_dim, hidden_dim, action_dim)
    ref = discriminator_ref(x, a, params)

    # Force the Pallas path at this small test batch (min_pallas_batch=0);
    # auto block_b -> 128, grid of 3 steps with a ragged last block.
    out = discriminator_forward(x, a, params, min_pallas_batch=0)
    out = jax.block_until_ready(out)
    assert out.shape == (batch, 1)
    assert jnp.allclose(out, ref, atol=1e-5, rtol=1e-5), (out, ref)

    # Also exercise the zero-copy features-major entry with an explicit tile.
    out_t = discriminator_forward_features_major(x.T, a.T, params, block_b=256)
    out_t = jax.block_until_ready(out_t)
    assert jnp.allclose(out_t, ref, atol=1e-5, rtol=1e-5), (out_t, ref)

    print("KERNEL_OK")
</pallas_src>

<mosaic_0001>
module attributes {stable_mosaic.version = 11 : i64} {
  func.func @_discriminator_kernel(%arg0: i32, %arg1: memref<4x128xf32, #tpu.memory_space<vmem>>, %arg2: memref<2x128xf32, #tpu.memory_space<vmem>>, %arg3: memref<128x4xf32, #tpu.memory_space<vmem>>, %arg4: memref<128x2xf32, #tpu.memory_space<vmem>>, %arg5: memref<128x1xf32, #tpu.memory_space<vmem>>, %arg6: memref<1x128xf32, #tpu.memory_space<vmem>>, %arg7: memref<1x1xf32, #tpu.memory_space<smem>>, %arg8: memref<1x128xf32, #tpu.memory_space<vmem>>) attributes {dimension_semantics = [#tpu.dimension_semantics<parallel>], iteration_bounds = array<i64: 3>, scalar_prefetch = 0 : i64, scratch_operands = 0 : i64, tpu.core_type = #tpu.core_type<tc>, window_params = [{transform_indices = @transform_0, window_bounds = array<i64: 4, 128>}, {transform_indices = @transform_1, window_bounds = array<i64: 2, 128>}, {pipeline_mode = #tpu.pipeline_mode<synchronous>, transform_indices = @transform_2, window_bounds = array<i64: 128, 4>}, {pipeline_mode = #tpu.pipeline_mode<synchronous>, transform_indices = @transform_3, window_bounds = array<i64: 128, 2>}, {pipeline_mode = #tpu.pipeline_mode<synchronous>, transform_indices = @transform_4, window_bounds = array<i64: 128, 1>}, {pipeline_mode = #tpu.pipeline_mode<synchronous>, transform_indices = @transform_5, window_bounds = array<i64: 1, 128>}, {transform_indices = @transform_6, window_bounds = array<i64: 1, 1>}, {transform_indices = @transform_7, window_bounds = array<i64: 1, 128>}]} {
    %c0 = arith.constant 0 : index
    %c0_0 = arith.constant 0 : index
    %0 = vector.load %arg3[%c0, %c0_0] : memref<128x4xf32, #tpu.memory_space<vmem>>, vector<128x4xf32>
    %c0_1 = arith.constant 0 : index
    %c0_2 = arith.constant 0 : index
    %1 = vector.load %arg1[%c0_1, %c0_2] : memref<4x128xf32, #tpu.memory_space<vmem>>, vector<4x128xf32>
    %cst = arith.constant dense<0.000000e+00> : vector<128x128xf32>
    %2 = tpu.matmul %0, %1, %cst {dimension_numbers = #tpu.dot_dimension_numbers<[1], [0], [0], [1], [0, 0, 1, 1], [], []>} : vector<128x4xf32>, vector<4x128xf32>, vector<128x128xf32> -> vector<128x128xf32>
    %c0_3 = arith.constant 0 : index
    %c0_4 = arith.constant 0 : index
    %3 = vector.load %arg4[%c0_3, %c0_4] : memref<128x2xf32, #tpu.memory_space<vmem>>, vector<128x2xf32>
    %c0_5 = arith.constant 0 : index
    %c0_6 = arith.constant 0 : index
    %4 = vector.load %arg2[%c0_5, %c0_6] : memref<2x128xf32, #tpu.memory_space<vmem>>, vector<2x128xf32>
    %cst_7 = arith.constant dense<0.000000e+00> : vector<128x128xf32>
    %5 = tpu.matmul %3, %4, %cst_7 {dimension_numbers = #tpu.dot_dimension_numbers<[1], [0], [0], [1], [0, 0, 1, 1], [], []>} : vector<128x2xf32>, vector<2x128xf32>, vector<128x128xf32> -> vector<128x128xf32>
    %6 = arith.addf %2, %5 : vector<128x128xf32>
    %c0_8 = arith.constant 0 : index
    %c0_9 = arith.constant 0 : index
    %7 = vector.load %arg5[%c0_8, %c0_9] : memref<128x1xf32, #tpu.memory_space<vmem>>, vector<128x1xf32>
    %8 = vector.broadcast %7 : vector<128x1xf32> to vector<128x128xf32>
    %9 = arith.addf %6, %8 : vector<128x128xf32>
    %cst_10 = arith.constant 0.000000e+00 : f32
    %10 = vector.broadcast %cst_10 : f32 to vector<128x128xf32>
    %11 = arith.maximumf %9, %10 : vector<128x128xf32>
    %c0_11 = arith.constant 0 : index
    %c0_12 = arith.constant 0 : index
    %12 = vector.load %arg6[%c0_11, %c0_12] : memref<1x128xf32, #tpu.memory_space<vmem>>, vector<1x128xf32>
    %cst_13 = arith.constant dense<0.000000e+00> : vector<1x128xf32>
    %13 = tpu.matmul %12, %11, %cst_13 {dimension_numbers = #tpu.dot_dimension_numbers<[1], [0], [0], [1], [0, 0, 1, 1], [], []>} : vector<1x128xf32>, vector<128x128xf32>, vector<1x128xf32> -> vector<1x128xf32>
    %c0_14 = arith.constant 0 : index
    %c0_15 = arith.constant 0 : index
    %14 = memref.load %arg7[%c0_14, %c0_15] : memref<1x1xf32, #tpu.memory_space<smem>>
    %15 = vector.broadcast %14 : f32 to vector<1x128xf32>
    %16 = arith.addf %13, %15 : vector<1x128xf32>
    %17 = arith.negf %16 : vector<1x128xf32>
    %18 = math.exp %17 : vector<1x128xf32>
    %cst_16 = arith.constant 1.000000e+00 : f32
    %19 = vector.broadcast %cst_16 : f32 to vector<1x128xf32>
    %20 = arith.addf %19, %18 : vector<1x128xf32>
    %21 = arith.divf %19, %20 : vector<1x128xf32>
    %c0_17 = arith.constant 0 : index
    %c0_18 = arith.constant 0 : index
    %22 = vector.load %arg8[%c0_17, %c0_18] : memref<1x128xf32, #tpu.memory_space<vmem>>, vector<1x128xf32>
    tpu.vector_store %arg8[%c0_17, %c0_18], %21 {strides = array<i32>} : memref<1x128xf32, #tpu.memory_space<vmem>>, vector<1x128xf32>,
    return
  }
  func.func @transform_0(%arg0: i32) -> (i32, i32) {
    %c0_i32 = arith.constant 0 : i32
    %c0_i32_0 = arith.constant 0 : i32
    return %c0_i32, %arg0 : i32, i32
  }
  func.func @transform_1(%arg0: i32) -> (i32, i32) {
    %c0_i32 = arith.constant 0 : i32
    %c0_i32_0 = arith.constant 0 : i32
    return %c0_i32, %arg0 : i32, i32
  }
  func.func @transform_2(%arg0: i32) -> (i32, i32) {
    %c0_i32 = arith.constant 0 : i32
    %c0_i32_0 = arith.constant 0 : i32
    %c0_i32_1 = arith.constant 0 : i32
    return %c0_i32, %c0_i32_0 : i32, i32
  }
  func.func @transform_3(%arg0: i32) -> (i32, i32) {
    %c0_i32 = arith.constant 0 : i32
    %c0_i32_0 = arith.constant 0 : i32
    %c0_i32_1 = arith.constant 0 : i32
    return %c0_i32, %c0_i32_0 : i32, i32
  }
  func.func @transform_4(%arg0: i32) -> (i32, i32) {
    %c0_i32 = arith.constant 0 : i32
    %c0_i32_0 = arith.constant 0 : i32
    %c0_i32_1 = arith.constant 0 : i32
    return %c0_i32, %c0_i32_0 : i32, i32
  }
  func.func @transform_5(%arg0: i32) -> (i32, i32) {
    %c0_i32 = arith.constant 0 : i32
    %c0_i32_0 = arith.constant 0 : i32
    %c0_i32_1 = arith.constant 0 : i32
    return %c0_i32, %c0_i32_0 : i32, i32
  }
  func.func @transform_6(%arg0: i32) -> (i32, i32) {
    %c0_i32 = arith.constant 0 : i32
    %c0_i32_0 = arith.constant 0 : i32
    %c0_i32_1 = arith.constant 0 : i32
    return %c0_i32, %c0_i32_0 : i32, i32
  }
  func.func @transform_7(%arg0: i32) -> (i32, i32) {
    %c0_i32 = arith.constant 0 : i32
    %c0_i32_0 = arith.constant 0 : i32
    return %c0_i32, %arg0 : i32, i32
  }
}

</mosaic_0001>

<llo_original>
// kernel: tpu_custom_call.1
$region0: #{tpu_custom_call.1}
  #allocation0 [shape = 'u32[]', space=smem, size = 0x4, offset = 0x4, fixed_abs, tag = 'smem constant byte address 0x4 - core index']
  #allocation1 [shape = 'u32[72,128]{1,0:T(1,128)}', space=vmem, size = 0x9000, scoped, tag = 'internal scratch']
  #allocation2 [shape = 'f32[1,1]{1,0:T(1,128)S(6)}', space=smem, size = 0x200, scoped, tag = 'scoped memory for tpu_custom_call.1']
  %s0 = inlined_call_operand.vmem [shape: f32[4,300], index: 0, kind: input, shape index: {}]
  %s1 = inlined_call_operand.vmem [shape: f32[2,300], index: 1, kind: input, shape index: {}]
  %s2 = inlined_call_operand.vmem [shape: f32[128,4], index: 2, kind: input, shape index: {}]
  %s3 = inlined_call_operand.vmem [shape: f32[128,2], index: 3, kind: input, shape index: {}]
  %s4 = inlined_call_operand.vmem [shape: f32[128,1], index: 4, kind: input, shape index: {}]
  %s5 = inlined_call_operand.vmem [shape: f32[1,128], index: 5, kind: input, shape index: {}]
  %s6 = inlined_call_operand.<no memory space> [shape: f32[1,1], index: 6, kind: input, shape index: {}]
  %s7 = inlined_call_operand.hbm [shape: f32[1,300], index: 7, kind: output, shape index: {}]
  %s8 = sld [smem:[#allocation0]]
  $region61: #{tpu_custom_call.1} parent=0
    _
  %s10 = ssub.s32 1, %s8
  %s11 = scalar_select 0, %s10, %s8
  %12 = sst [smem:[#allocation2]] %s6
  $region1: #{tpu_custom_call.1} parent=0
    #allocation3 [shape = 'u8[1024]{0}', space=vmem, size = 0x400, scoped, tag = 'output window, operand 0']
    #allocation4 [shape = 's32[2]{0}', space=sflag, size = 0x8, scoped, tag = 'scoped memory for tpu_custom_call.1']
    %13 = vsyncpa [#allocation4], 0
    %s14 = scalar_lea.sflag [#allocation4], 1
    %15 = vsyncpa %s14, 0
    loop: start=0, step=1, limit=5
    $region2: #{tpu_custom_call.1} parent=1 // loop_pre_header
      _
    $region3: #{tpu_custom_call.1} parent=1 // loop_header
      %s17 = sphi 0, %s21
      %p18 = scmp.ge.s32.totalorder %s17, 5
      %s27 = sphi 0, %s29
      %s30 = sphi 0, %s27
      %s31 = sphi 0, %s30
      %s47 = sphi 0, %s31
      %s53 = sphi 0, %s55
      %s56 = sphi 0, %s53
      %s57 = sphi 0, %s56
      %s73 = sphi 0, %s57
      %s77 = sphi 0, %s77
      %s79 = sphi 0, %s77
      %s80 = sphi 0, %s79
      %s94 = sphi 0, %s80
      %s98 = sphi 0, %s98
      %s100 = sphi 0, %s98
      %s101 = sphi 0, %s100
      %s115 = sphi 0, %s101
      %s119 = sphi 0, %s119
      %s121 = sphi 0, %s119
      %s122 = sphi 0, %s121
      %s136 = sphi 0, %s122
      %s140 = sphi 0, %s140
      %s142 = sphi 0, %s140
      %s143 = sphi 0, %s142
      %s157 = sphi 0, %s143
      %s161 = sphi 0, %s161
      %s163 = sphi 0, %s161
      %s164 = sphi 0, %s163
      %s178 = sphi 0, %s164
      %s184 = sphi 0, %s186
      %s187 = sphi 0, %s184
      %s188 = sphi 0, %s187
      %s204 = sphi 0, %s188
    $region4: #{tpu_custom_call.1} parent=1 // loop_header_branch
      %20 = sbr.rel (%p18) target = $region8
    $region5: #{tpu_custom_call.1} parent=1 // loop_body
      %s22 = ssub.s32 %s17, 1
      %s23 = ssub.s32 %s17, 2
      %s24 = sadd.s32 %s17, 1
      %s25 = ssub.s32 %s17, %s24
      %p26 = scmp.eq.s32.totalorder %s25, 0
      %s28 = sadd.s32 %s27, 1
      %s29 = scalar_select %p26, %s27, %s28
      %p32 = pneg %p26
      %p33 = scmp.eq.s32.totalorder %s17, 2
      %p34 = por %p32, %p33
      %p35 = scmp.ne.s32.totalorder %s27, %s30
      %p36 = scmp.eq.s32.totalorder %s17, 0
      %p37 = por %p35, %p36
      %p38 = scmp.ne.s32.totalorder %s27, %s30
      %p39 = scmp.eq.s32.totalorder %s22, 2
      %p40 = por %p38, %p39
      %p41 = scmp.ne.s32.totalorder %s30, %s31
      %p42 = scmp.eq.s32.totalorder %s22, 0
      %p43 = por %p41, %p42
      %p44 = scmp.ne.s32.totalorder %s30, %s31
      %p45 = scmp.eq.s32.totalorder %s23, 2
      %p46 = por %p44, %p45
      %p48 = scmp.ne.s32.totalorder %s31, %s47
      %p49 = scmp.eq.s32.totalorder %s23, 0
      %p50 = por %p48, %p49
      %s51 = ssub.s32 %s17, %s24
      %p52 = scmp.eq.s32.totalorder %s51, 0
      %s54 = sadd.s32 %s53, 1
      %s55 = scalar_select %p52, %s53, %s54
      %p58 = pneg %p52
      %p59 = scmp.eq.s32.totalorder %s17, 2
      %p60 = por %p58, %p59
      %p61 = scmp.ne.s32.totalorder %s53, %s56
      %p62 = scmp.eq.s32.totalorder %s17, 0
      %p63 = por %p61, %p62
      %p64 = scmp.ne.s32.totalorder %s53, %s56
      %p65 = scmp.eq.s32.totalorder %s22, 2
      %p66 = por %p64, %p65
      %p67 = scmp.ne.s32.totalorder %s56, %s57
      %p68 = scmp.eq.s32.totalorder %s22, 0
      %p69 = por %p67, %p68
      %p70 = scmp.ne.s32.totalorder %s56, %s57
      %p71 = scmp.eq.s32.totalorder %s23, 2
      %p72 = por %p70, %p71
      %p74 = scmp.ne.s32.totalorder %s57, %s73
      %p75 = scmp.eq.s32.totalorder %s23, 0
      %p76 = por %p74, %p75
      %s78 = sadd.s32 %s77, 1
      %p81 = scmp.eq.s32.totalorder %s17, 2
      %p82 = scmp.ne.s32.totalorder %s77, %s79
      %p83 = scmp.eq.s32.totalorder %s17, 0
      %p84 = por %p82, %p83
      %p85 = scmp.ne.s32.totalorder %s77, %s79
      %p86 = scmp.eq.s32.totalorder %s22, 2
      %p87 = por %p85, %p86
      %p88 = scmp.ne.s32.totalorder %s79, %s80
      %p89 = scmp.eq.s32.totalorder %s22, 0
      %p90 = por %p88, %p89
      %p91 = scmp.ne.s32.totalorder %s79, %s80
      %p92 = scmp.eq.s32.totalorder %s23, 2
      %p93 = por %p91, %p92
      %p95 = scmp.ne.s32.totalorder %s80, %s94
      %p96 = scmp.eq.s32.totalorder %s23, 0
      %p97 = por %p95, %p96
      %s99 = sadd.s32 %s98, 1
      %p102 = scmp.eq.s32.totalorder %s17, 2
      %p103 = scmp.ne.s32.totalorder %s98, %s100
      %p104 = scmp.eq.s32.totalorder %s17, 0
      %p105 = por %p103, %p104
      %p106 = scmp.ne.s32.totalorder %s98, %s100
      %p107 = scmp.eq.s32.totalorder %s22, 2
      %p108 = por %p106, %p107
      %p109 = scmp.ne.s32.totalorder %s100, %s101
      %p110 = scmp.eq.s32.totalorder %s22, 0
      %p111 = por %p109, %p110
      %p112 = scmp.ne.s32.totalorder %s100, %s101
      %p113 = scmp.eq.s32.totalorder %s23, 2
      %p114 = por %p112, %p113
      %p116 = scmp.ne.s32.totalorder %s101, %s115
      %p117 = scmp.eq.s32.totalorder %s23, 0
      %p118 = por %p116, %p117
      %s120 = sadd.s32 %s119, 1
      %p123 = scmp.eq.s32.totalorder %s17, 2
      %p124 = scmp.ne.s32.totalorder %s119, %s121
      %p125 = scmp.eq.s32.totalorder %s17, 0
      %p126 = por %p124, %p125
      %p127 = scmp.ne.s32.totalorder %s119, %s121
      %p128 = scmp.eq.s32.totalorder %s22, 2
      %p129 = por %p127, %p128
      %p130 = scmp.ne.s32.totalorder %s121, %s122
      %p131 = scmp.eq.s32.totalorder %s22, 0
      %p132 = por %p130, %p131
      %p133 = scmp.ne.s32.totalorder %s121, %s122
      %p134 = scmp.eq.s32.totalorder %s23, 2
      %p135 = por %p133, %p134
      %p137 = scmp.ne.s32.totalorder %s122, %s136
      %p138 = scmp.eq.s32.totalorder %s23, 0
      %p139 = por %p137, %p138
      %s141 = sadd.s32 %s140, 1
      %p144 = scmp.eq.s32.totalorder %s17, 2
      %p145 = scmp.ne.s32.totalorder %s140, %s142
      %p146 = scmp.eq.s32.totalorder %s17, 0
      %p147 = por %p145, %p146
      %p148 = scmp.ne.s32.totalorder %s140, %s142
      %p149 = scmp.eq.s32.totalorder %s22, 2
      %p150 = por %p148, %p149
      %p151 = scmp.ne.s32.totalorder %s142, %s143
      %p152 = scmp.eq.s32.totalorder %s22, 0
      %p153 = por %p151, %p152
      %p154 = scmp.ne.s32.totalorder %s142, %s143
      %p155 = scmp.eq.s32.totalorder %s23, 2
      %p156 = por %p154, %p155
      %p158 = scmp.ne.s32.totalorder %s143, %s157
      %p159 = scmp.eq.s32.totalorder %s23, 0
      %p160 = por %p158, %p159
      %s162 = sadd.s32 %s161, 1
      %p165 = scmp.eq.s32.totalorder %s17, 2
      %p166 = scmp.ne.s32.totalorder %s161, %s163
      %p167 = scmp.eq.s32.totalorder %s17, 0
      %p168 = por %p166, %p167
      %p169 = scmp.ne.s32.totalorder %s161, %s163
      %p170 = scmp.eq.s32.totalorder %s22, 2
      %p171 = por %p169, %p170
      %p172 = scmp.ne.s32.totalorder %s163, %s164
      %p173 = scmp.eq.s32.totalorder %s22, 0
      %p174 = por %p172, %p173
      %p175 = scmp.ne.s32.totalorder %s163, %s164
      %p176 = scmp.eq.s32.totalorder %s23, 2
      %p177 = por %p175, %p176
      %p179 = scmp.ne.s32.totalorder %s164, %s178
      %p180 = scmp.eq.s32.totalorder %s23, 0
      %p181 = por %p179, %p180
      %s182 = ssub.s32 %s17, %s24
      %p183 = scmp.eq.s32.totalorder %s182, 0
      %s185 = sadd.s32 %s184, 1
      %s186 = scalar_select %p183, %s184, %s185
      %p189 = pneg %p183
      %p190 = scmp.eq.s32.totalorder %s17, 2
      %p191 = por %p189, %p190
      %p192 = scmp.ne.s32.totalorder %s184, %s187
      %p193 = scmp.eq.s32.totalorder %s17, 0
      %p194 = por %p192, %p193
      %p195 = scmp.ne.s32.totalorder %s184, %s187
      %p196 = scmp.eq.s32.totalorder %s22, 2
      %p197 = por %p195, %p196
      %p198 = scmp.ne.s32.totalorder %s187, %s188
      %p199 = scmp.eq.s32.totalorder %s22, 0
      %p200 = por %p198, %p199
      %p201 = scmp.ne.s32.totalorder %s187, %s188
      %p202 = scmp.eq.s32.totalorder %s23, 2
      %p203 = por %p201, %p202
      %p205 = scmp.ne.s32.totalorder %s188, %s204
      %p206 = scmp.eq.s32.totalorder %s23, 0
      %p207 = por %p205, %p206
      %p208 = scmp.le.s32.totalorder 1, %s17
      %p209 = scmp.lt.s32.totalorder %s17, 4
      %p210 = pnand %p208, %p209
      %p211 = pneg %p210
      // Predicated region
      $region9: #{tpu_custom_call.1} parent=5 // pred_check
        _
      $region10: #{tpu_custom_call.1} parent=5 // pred_check_branch
        %213 = sbr.rel (%p210) target = $region12
      $region11: #{tpu_custom_call.1} parent=5 // pred_region
        %s214 = ssub.s32 %s17, 1
        // Predicated region
        $region13: #{tpu_custom_call.1} parent=11 // pred_check
          %p215 = pneg %p90
        $region14: #{tpu_custom_call.1} parent=11 // pred_check_branch
          %217 = sbr.rel (%p215) target = $region16
        $region15: #{tpu_custom_call.1} parent=11 // pred_region
          _
        $region16: #{tpu_custom_call.1} parent=11 // pred_fallthru
          _
        // Predicated region
        $region17: #{tpu_custom_call.1} parent=11 // pred_check
          %p218 = pneg %p111
        $region18: #{tpu_custom_call.1} parent=11 // pred_check_branch
          %220 = sbr.rel (%p218) target = $region20
        $region19: #{tpu_custom_call.1} parent=11 // pred_region
          _
        $region20: #{tpu_custom_call.1} parent=11 // pred_fallthru
          _
        // Predicated region
        $region21: #{tpu_custom_call.1} parent=11 // pred_check
          %p221 = pneg %p132
        $region22: #{tpu_custom_call.1} parent=11 // pred_check_branch
          %223 = sbr.rel (%p221) target = $region24
        $region23: #{tpu_custom_call.1} parent=11 // pred_region
          _
        $region24: #{tpu_custom_call.1} parent=11 // pred_fallthru
          _
        // Predicated region
        $region25: #{tpu_custom_call.1} parent=11 // pred_check
          %p224 = pneg %p153
        $region26: #{tpu_custom_call.1} parent=11 // pred_check_branch
          %226 = sbr.rel (%p224) target = $region28
        $region27: #{tpu_custom_call.1} parent=11 // pred_region
          _
        $region28: #{tpu_custom_call.1} parent=11 // pred_fallthru
          _
        // Predicated region
        $region29: #{tpu_custom_call.1} parent=11 // pred_check
          %p227 = pneg %p174
        $region30: #{tpu_custom_call.1} parent=11 // pred_check_branch
          %229 = sbr.rel (%p227) target = $region32
        $region31: #{tpu_custom_call.1} parent=11 // pred_region
          _
        $region32: #{tpu_custom_call.1} parent=11 // pred_fallthru
          _
      $region12: #{tpu_custom_call.1} parent=5 // pred_fallthru
        _
      %p230 = scmp.lt.s32.totalorder %s17, 3
      // Predicated region
      $region33: #{tpu_custom_call.1} parent=5 // pred_check
        %p231 = pneg %p230
      $region34: #{tpu_custom_call.1} parent=5 // pred_check_branch
        %233 = sbr.rel (%p231) target = $region36
      $region35: #{tpu_custom_call.1} parent=5 // pred_region
        // Predicated region
        $region37: #{tpu_custom_call.1} parent=35 // pred_check
          %p234 = pneg %p37
        $region38: #{tpu_custom_call.1} parent=35 // pred_check_branch
          %236 = sbr.rel (%p234) target = $region40
        $region39: #{tpu_custom_call.1} parent=35 // pred_region
          %p237 = scmp.lt.s32.totalorder %s17, 2
          %s238 = scalar_select %p237, %s17, 2
          %s239 = smul.addr %s238, 4
          %s240 = scalar_lea.vmem %s0, %s239
        $region40: #{tpu_custom_call.1} parent=35 // pred_fallthru
          _
        // Predicated region
        $region41: #{tpu_custom_call.1} parent=35 // pred_check
          %p241 = pneg %p63
        $region42: #{tpu_custom_call.1} parent=35 // pred_check_branch
          %243 = sbr.rel (%p241) target = $region44
        $region43: #{tpu_custom_call.1} parent=35 // pred_region
          %p244 = scmp.lt.s32.totalorder %s17, 2
          %s245 = scalar_select %p244, %s17, 2
          %s246 = smul.addr %s245, 2
          %s247 = scalar_lea.vmem %s1, %s246
        $region44: #{tpu_custom_call.1} parent=35 // pred_fallthru
          _
      $region36: #{tpu_custom_call.1} parent=5 // pred_fallthru
        _
      %p248 = scmp.le.s32.totalorder 1, %s17
      %p249 = scmp.lt.s32.totalorder %s17, 4
      %p250 = pnand %p248, %p249
      %p251 = pneg %p250
      // Predicated region
      $region45: #{tpu_custom_call.1} parent=5 // pred_check
        _
      $region46: #{tpu_custom_call.1} parent=5 // pred_check_branch
        %253 = sbr.rel (%p250) target = $region48
      $region47: #{tpu_custom_call.1} parent=5 // pred_region
        %s254 = ssub.s32 %s17, 1
        %p255 = scmp.lt.s32.totalorder %s22, 2
        %s256 = scalar_select %p255, %s22, 2
        %s257 = smul.addr %s256, 4
        %s258 = scalar_lea.vmem %s0, %s257
        %p259 = pneg %p43
        %p260 = pneg %p40
        %p261 = scmp.lt.s32.totalorder %s22, 2
        %s262 = scalar_select %p261, %s22, 2
        %s263 = smul.addr %s262, 2
        %s264 = scalar_lea.vmem %s1, %s263
        %p265 = pneg %p69
        %p266 = pneg %p66
        %p267 = pneg %p90
        %p268 = pneg %p87
        %p269 = pneg %p111
        %p270 = pneg %p108
        %p271 = pneg %p132
        %p272 = pneg %p129
        %p273 = pneg %p153
        %p274 = pneg %p150
        %p275 = pneg %p174
        %p276 = pneg %p171
        %p277 = pneg %p200
        %p278 = pneg %p197
        %s279 = sand.u32 %s187, 1
        %s280 = scalar_lea.sflag [#allocation4], %s279
        %s281 = sand.u32 %s187, 1
        %s282 = scalar_lea.vmem [#allocation3], %s281
        %p283 = scmp.lt.s32.totalorder %s22, 2
        %s284 = scalar_select %p283, %s22, 2
        %s285 = smul.addr %s284, 4
        %s286 = scalar_lea.vmem %s0, %s285
        %p287 = scmp.lt.s32.totalorder %s22, 2
        %s288 = scalar_select %p287, %s22, 2
        %s289 = smul.addr %s288, 2
        %s290 = scalar_lea.vmem %s1, %s289
        %v291 = vld [vmem:[%s2] sm:$0xff]
        %v292 = vld [vmem:[%s2 + $0x8] sm:$0xff]
        %v293 = vld [vmem:[%s2 + $0x10] sm:$0xff]
        %v294 = vld [vmem:[%s2 + $0x18] sm:$0xff]
        %v295 = vld [vmem:[%s2 + $0x20] sm:$0xff]
        %v296 = vld [vmem:[%s2 + $0x28] sm:$0xff]
        %v297 = vld [vmem:[%s2 + $0x30] sm:$0xff]
        %v298 = vld [vmem:[%s2 + $0x38] sm:$0xff]
        %v299 = vld [vmem:[%s2 + $0x40] sm:$0xff]
        %v300 = vld [vmem:[%s2 + $0x48] sm:$0xff]
        %v301 = vld [vmem:[%s2 + $0x50] sm:$0xff]
        %v302 = vld [vmem:[%s2 + $0x58] sm:$0xff]
        %v303 = vld [vmem:[%s2 + $0x60] sm:$0xff]
        %v304 = vld [vmem:[%s2 + $0x68] sm:$0xff]
        %v305 = vld [vmem:[%s2 + $0x70] sm:$0xff]
        %v306 = vld [vmem:[%s2 + $0x78] sm:$0xff]
        %v307 = vld [vmem:[%s286] sm:$0xf]
        %v308 = vld [vmem:[%s3] sm:$0xff]
        %v309 = vld [vmem:[%s3 + $0x8] sm:$0xff]
        %v310 = vld [vmem:[%s3 + $0x10] sm:$0xff]
        %v311 = vld [vmem:[%s3 + $0x18] sm:$0xff]
        %v312 = vld [vmem:[%s3 + $0x20] sm:$0xff]
        %v313 = vld [vmem:[%s3 + $0x28] sm:$0xff]
        %v314 = vld [vmem:[%s3 + $0x30] sm:$0xff]
        %v315 = vld [vmem:[%s3 + $0x38] sm:$0xff]
        %v316 = vld [vmem:[%s3 + $0x40] sm:$0xff]
        %v317 = vld [vmem:[%s3 + $0x48] sm:$0xff]
        %v318 = vld [vmem:[%s3 + $0x50] sm:$0xff]
        %v319 = vld [vmem:[%s3 + $0x58] sm:$0xff]
        %v320 = vld [vmem:[%s3 + $0x60] sm:$0xff]
        %v321 = vld [vmem:[%s3 + $0x68] sm:$0xff]
        %v322 = vld [vmem:[%s3 + $0x70] sm:$0xff]
        %v323 = vld [vmem:[%s3 + $0x78] sm:$0xff]
        %v324 = vld [vmem:[%s290] sm:$0x3]
        %vm325 = vcmask 15360
        %v327 = vsel %vm325, %v308, 0
        %v330 = vsel %vm325, %v309, 0
        %v333 = vsel %vm325, %v310, 0
        %v336 = vsel %vm325, %v311, 0
        %v339 = vsel %vm325, %v312, 0
        %v342 = vsel %vm325, %v313, 0
        %v345 = vsel %vm325, %v314, 0
        %v348 = vsel %vm325, %v315, 0
        %v351 = vsel %vm325, %v316, 0
        %v354 = vsel %vm325, %v317, 0
        %v357 = vsel %vm325, %v318, 0
        %v360 = vsel %vm325, %v319, 0
        %v363 = vsel %vm325, %v320, 0
        %v366 = vsel %vm325, %v321, 0
        %v369 = vsel %vm325, %v322, 0
        %v372 = vsel %vm325, %v323, 0
        %vm374 = vcmask 1041408
        %v376 = vsel %vm374, %v324, 0
        %378 = vmatpush.msra.mxu0 0.0
        %379 = vmatpush.msra.mxu0 0.0
        %380 = vmatpush.msra.mxu0 0.0
        %381 = vmatpush.msra.mxu0 0.0
        %382 = vmatpush.msra.mxu0 0.0
        %383 = vmatpush.msra.mxu0 0.0
        %384 = vmatpush.msra.mxu0 0.0
        %385 = vmatpush.msra.mxu0 0.0
        %386 = vmatpush.msra.mxu0 0.0
        %387 = vmatpush.msra.mxu0 0.0
        %388 = vmatpush.msra.mxu0 0.0
        %389 = vmatpush.msra.mxu0 0.0
        %390 = vmatpush.msra.mxu0 0.0
        %391 = vmatpush.msra.mxu0 0.0
        %392 = vmatpush.msra.mxu0 0.0
        %393 = vmatpush.msra.mxu0 %v376
        %394 = vmatmul.f32.gmra.mxu0 %v327
        %v395 = vpop.f32.mrf.mxu0
        %v396 = vadd.f32 0.0, %v395
        %397 = vmatmul.f32.gmra.mxu0 %v330
        %v398 = vpop.f32.mrf.mxu0
        %v399 = vadd.f32 0.0, %v398
        %400 = vmatmul.f32.gmra.mxu0 %v333
        %v401 = vpop.f32.mrf.mxu0
        %v402 = vadd.f32 0.0, %v401
        %403 = vmatmul.f32.gmra.mxu0 %v336
        %v404 = vpop.f32.mrf.mxu0
        %v405 = vadd.f32 0.0, %v404
        %406 = vmatmul.f32.gmra.mxu0 %v339
        %v407 = vpop.f32.mrf.mxu0
        %v408 = vadd.f32 0.0, %v407
        %409 = vmatmul.f32.gmra.mxu0 %v342
        %v410 = vpop.f32.mrf.mxu0
        %v411 = vadd.f32 0.0, %v410
        %412 = vmatmul.f32.gmra.mxu0 %v345
        %v413 = vpop.f32.mrf.mxu0
        %v414 = vadd.f32 0.0, %v413
        %415 = vmatmul.f32.gmra.mxu0 %v348
        %v416 = vpop.f32.mrf.mxu0
        %v417 = vadd.f32 0.0, %v416
        %418 = vmatmul.f32.gmra.mxu0 %v351
        %v419 = vpop.f32.mrf.mxu0
        %v420 = vadd.f32 0.0, %v419
        %421 = vmatmul.f32.gmra.mxu0 %v354
        %v422 = vpop.f32.mrf.mxu0
        %v423 = vadd.f32 0.0, %v422
        %424 = vmatmul.f32.gmra.mxu0 %v357
        %v425 = vpop.f32.mrf.mxu0
        %v426 = vadd.f32 0.0, %v425
        %427 = vmatmul.f32.gmra.mxu0 %v360
        %v428 = vpop.f32.mrf.mxu0
        %v429 = vadd.f32 0.0, %v428
        %430 = vmatmul.f32.gmra.mxu0 %v363
        %v431 = vpop.f32.mrf.mxu0
        %v432 = vadd.f32 0.0, %v431
        %433 = vmatmul.f32.gmra.mxu0 %v366
        %v434 = vpop.f32.mrf.mxu0
        %v435 = vadd.f32 0.0, %v434
        %436 = vmatmul.f32.gmra.mxu0 %v369
        %v437 = vpop.f32.mrf.mxu0
        %v438 = vadd.f32 0.0, %v437
        %439 = vmatmul.f32.gmra.mxu0 %v372
        %v440 = vpop.f32.mrf.mxu0
        %v441 = vadd.f32 0.0, %v440
        %442 = vdwg.mxu0
        %vm443 = vcmask 31744
        %v445 = vsel %vm443, %v291, 0
        %v448 = vsel %vm443, %v292, 0
        %v451 = vsel %vm443, %v293, 0
        %v454 = vsel %vm443, %v294, 0
        %v457 = vsel %vm443, %v295, 0
        %v460 = vsel %vm443, %v296, 0
        %v463 = vsel %vm443, %v297, 0
        %v466 = vsel %vm443, %v298, 0
        %v469 = vsel %vm443, %v299, 0
        %v472 = vsel %vm443, %v300, 0
        %v475 = vsel %vm443, %v301, 0
        %v478 = vsel %vm443, %v302, 0
        %v481 = vsel %vm443, %v303, 0
        %v484 = vsel %vm443, %v304, 0
        %v487 = vsel %vm443, %v305, 0
        %v490 = vsel %vm443, %v306, 0
        %vm492 = vcmask 1043456
        %v494 = vsel %vm492, %v307, 0
        %496 = vmatpush.msra.mxu0 0.0
        %497 = vmatpush.msra.mxu0 0.0
        %498 = vmatpush.msra.mxu0 0.0
        %499 = vmatpush.msra.mxu0 0.0
        %500 = vmatpush.msra.mxu0 0.0
        %501 = vmatpush.msra.mxu0 0.0
        %502 = vmatpush.msra.mxu0 0.0
        %503 = vmatpush.msra.mxu0 0.0
        %504 = vmatpush.msra.mxu0 0.0
        %505 = vmatpush.msra.mxu0 0.0
        %506 = vmatpush.msra.mxu0 0.0
        %507 = vmatpush.msra.mxu0 0.0
        %508 = vmatpush.msra.mxu0 0.0
        %509 = vmatpush.msra.mxu0 0.0
        %510 = vmatpush.msra.mxu0 0.0
        %511 = vmatpush.msra.mxu0 %v494
        %512 = vmatmul.f32.gmra.mxu0 %v445
        %v513 = vpop.f32.mrf.mxu0
        %v514 = vadd.f32 %v396, %v513
        %515 = vmatmul.f32.gmra.mxu0 %v448
        %v516 = vpop.f32.mrf.mxu0
        %v517 = vadd.f32 %v399, %v516
        %518 = vmatmul.f32.gmra.mxu0 %v451
        %v519 = vpop.f32.mrf.mxu0
        %v520 = vadd.f32 %v402, %v519
        %521 = vmatmul.f32.gmra.mxu0 %v454
        %v522 = vpop.f32.mrf.mxu0
        %v523 = vadd.f32 %v405, %v522
        %524 = vmatmul.f32.gmra.mxu0 %v457
        %v525 = vpop.f32.mrf.mxu0
        %v526 = vadd.f32 %v408, %v525
        %527 = vmatmul.f32.gmra.mxu0 %v460
        %v528 = vpop.f32.mrf.mxu0
        %v529 = vadd.f32 %v411, %v528
        %530 = vmatmul.f32.gmra.mxu0 %v463
        %v531 = vpop.f32.mrf.mxu0
        %v532 = vadd.f32 %v414, %v531
        %533 = vmatmul.f32.gmra.mxu0 %v466
        %v534 = vpop.f32.mrf.mxu0
        %v535 = vadd.f32 %v417, %v534
        %536 = vmatmul.f32.gmra.mxu0 %v469
        %v537 = vpop.f32.mrf.mxu0
        %v538 = vadd.f32 %v420, %v537
        %539 = vmatmul.f32.gmra.mxu0 %v472
        %v540 = vpop.f32.mrf.mxu0
        %v541 = vadd.f32 %v423, %v540
        %542 = vmatmul.f32.gmra.mxu0 %v475
        %v543 = vpop.f32.mrf.mxu0
        %v544 = vadd.f32 %v426, %v543
        %545 = vmatmul.f32.gmra.mxu0 %v478
        %v546 = vpop.f32.mrf.mxu0
        %v547 = vadd.f32 %v429, %v546
        %548 = vmatmul.f32.gmra.mxu0 %v481
        %v549 = vpop.f32.mrf.mxu0
        %v550 = vadd.f32 %v432, %v549
        %551 = vmatmul.f32.gmra.mxu0 %v484
        %v552 = vpop.f32.mrf.mxu0
        %v553 = vadd.f32 %v435, %v552
        %554 = vmatmul.f32.gmra.mxu0 %v487
        %v555 = vpop.f32.mrf.mxu0
        %v556 = vadd.f32 %v438, %v555
        %557 = vmatmul.f32.gmra.mxu0 %v490
        %v558 = vpop.f32.mrf.mxu0
        %v559 = vadd.f32 %v441, %v558
        %560 = vdwg.mxu0
        %v561 = vld [vmem:[%s4] sm:$0xff]
        %v562 = vld [vmem:[%s4 + $0x8] sm:$0xff]
        %v563 = vld [vmem:[%s4 + $0x10] sm:$0xff]
        %v564 = vld [vmem:[%s4 + $0x18] sm:$0xff]
        %v565 = vld [vmem:[%s4 + $0x20] sm:$0xff]
        %v566 = vld [vmem:[%s4 + $0x28] sm:$0xff]
        %v567 = vld [vmem:[%s4 + $0x30] sm:$0xff]
        %v568 = vld [vmem:[%s4 + $0x38] sm:$0xff]
        %v569 = vld [vmem:[%s4 + $0x40] sm:$0xff]
        %v570 = vld [vmem:[%s4 + $0x48] sm:$0xff]
        %v571 = vld [vmem:[%s4 + $0x50] sm:$0xff]
        %v572 = vld [vmem:[%s4 + $0x58] sm:$0xff]
        %v573 = vld [vmem:[%s4 + $0x60] sm:$0xff]
        %v574 = vld [vmem:[%s4 + $0x68] sm:$0xff]
        %v575 = vld [vmem:[%s4 + $0x70] sm:$0xff]
        %v576 = vld [vmem:[%s4 + $0x78] sm:$0xff]
        %578 = vset.pattern.permute.xlu0 0
        %579 = vperm.xlu0 %578, %v561
        %v580 = vpop.permute.xlu0 %579
        %583 = vset.pattern.permute.xlu0 0
        %584 = vperm.xlu0 %583, %v562
        %v585 = vpop.permute.xlu0 %584
        %588 = vset.pattern.permute.xlu0 0
        %589 = vperm.xlu0 %588, %v563
        %v590 = vpop.permute.xlu0 %589
        %593 = vset.pattern.permute.xlu0 0
        %594 = vperm.xlu0 %593, %v564
        %v595 = vpop.permute.xlu0 %594
        %598 = vset.pattern.permute.xlu0 0
        %599 = vperm.xlu0 %598, %v565
        %v600 = vpop.permute.xlu0 %599
        %603 = vset.pattern.permute.xlu0 0
        %604 = vperm.xlu0 %603, %v566
        %v605 = vpop.permute.xlu0 %604
        %608 = vset.pattern.permute.xlu0 0
        %609 = vperm.xlu0 %608, %v567
        %v610 = vpop.permute.xlu0 %609
        %613 = vset.pattern.permute.xlu0 0
        %614 = vperm.xlu0 %613, %v568
        %v615 = vpop.permute.xlu0 %614
        %618 = vset.pattern.permute.xlu0 0
        %619 = vperm.xlu0 %618, %v569
        %v620 = vpop.permute.xlu0 %619
        %623 = vset.pattern.permute.xlu0 0
        %624 = vperm.xlu0 %623, %v570
        %v625 = vpop.permute.xlu0 %624
        %628 = vset.pattern.permute.xlu0 0
        %629 = vperm.xlu0 %628, %v571
        %v630 = vpop.permute.xlu0 %629
        %633 = vset.pattern.permute.xlu0 0
        %634 = vperm.xlu0 %633, %v572
        %v635 = vpop.permute.xlu0 %634
        %638 = vset.pattern.permute.xlu0 0
        %639 = vperm.xlu0 %638, %v573
        %v640 = vpop.permute.xlu0 %639
        %643 = vset.pattern.permute.xlu0 0
        %644 = vperm.xlu0 %643, %v574
        %v645 = vpop.permute.xlu0 %644
        %648 = vset.pattern.permute.xlu0 0
        %649 = vperm.xlu0 %648, %v575
        %v650 = vpop.permute.xlu0 %649
        %653 = vset.pattern.permute.xlu0 0
        %654 = vperm.xlu0 %653, %v576
        %v655 = vpop.permute.xlu0 %654
        %v657 = vadd.f32 %v514, %v580
        %v658 = vadd.f32 %v517, %v585
        %v659 = vadd.f32 %v520, %v590
        %v660 = vadd.f32 %v523, %v595
        %v661 = vadd.f32 %v526, %v600
        %v662 = vadd.f32 %v529, %v605
        %v663 = vadd.f32 %v532, %v610
        %v664 = vadd.f32 %v535, %v615
        %v665 = vadd.f32 %v538, %v620
        %v666 = vadd.f32 %v541, %v625
        %v667 = vadd.f32 %v544, %v630
        %v668 = vadd.f32 %v547, %v635
        %v669 = vadd.f32 %v550, %v640
        %v670 = vadd.f32 %v553, %v645
        %v671 = vadd.f32 %v556, %v650
        %v672 = vadd.f32 %v559, %v655
        %v673 = vmax.f32 %v657, 0.0
        %v674 = vmax.f32 %v658, 0.0
        %v675 = vmax.f32 %v659, 0.0
        %v676 = vmax.f32 %v660, 0.0
        %v677 = vmax.f32 %v661, 0.0
        %v678 = vmax.f32 %v662, 0.0
        %v679 = vmax.f32 %v663, 0.0
        %v680 = vmax.f32 %v664, 0.0
        %v681 = vmax.f32 %v665, 0.0
        %v682 = vmax.f32 %v666, 0.0
        %v683 = vmax.f32 %v667, 0.0
        %v684 = vmax.f32 %v668, 0.0
        %v685 = vmax.f32 %v669, 0.0
        %v686 = vmax.f32 %v670, 0.0
        %v687 = vmax.f32 %v671, 0.0
        %v688 = vmax.f32 %v672, 0.0
        %v689 = vld [vmem:[%s5] sm:$0x1]
        %s690 = sld [smem:[#allocation2]]
        %v691 = vstv %s690
        %692 = vmatpush.msra.mxu0 %v688
        %693 = vmatpush.msra.mxu0 %v687
        %694 = vmatpush.msra.mxu0 %v686
        %695 = vmatpush.msra.mxu0 %v685
        %696 = vmatpush.msra.mxu0 %v684
        %697 = vmatpush.msra.mxu0 %v683
        %698 = vmatpush.msra.mxu0 %v682
        %699 = vmatpush.msra.mxu0 %v681
        %700 = vmatpush.msra.mxu0 %v680
        %701 = vmatpush.msra.mxu0 %v679
        %702 = vmatpush.msra.mxu0 %v678
        %703 = vmatpush.msra.mxu0 %v677
        %704 = vmatpush.msra.mxu0 %v676
        %705 = vmatpush.msra.mxu0 %v675
        %706 = vmatpush.msra.mxu0 %v674
        %707 = vmatpush.msra.mxu0 %v673
        %708 = vmatmul.f32.gmra.mxu0 %v689
        %v709 = vpop.f32.mrf.mxu0
        %v710 = vadd.f32 %v691, %v709
        %711 = vdwg.mxu0
        %v712 = vxor.u32 %v710, 2147483648
        %v713 = vmul.f32 %v712, 1.442695
        %v714 = vpow.pop %v713
        %v715 = vadd.f32 %v714, 1.0
        %v716 = vrcp.pop %v715
        %v717 = vmul.f32 %v715, %v716
        %v718 = vsub.f32 1.0, %v717
        %v719 = vmul.f32 %v716, %v718
        %v720 = vadd.f32 %v716, %v719
        %vm721 = vweird.f32 %v715
        %vm722 = vweird.f32 %v716
        %vm723 = vmor %vm721, %vm722
        %v724 = vsel %vm723, %v716, %v720
        %v725 = vand.u32 2147483647, %v715
        %vm726 = vcmp.eq.f32.partialorder %v725, 8.507059e+37
        %v727 = vand.u32 %v715, 2147483648
        %v728 = vor.u32 1.1754944e-38, %v727
        %v729 = vsel %vm726, %v728, %v724
        %v730 = vmul.f32 1.0, %v729
        %731 = vst [vmem:[%s282] sm:$0x1] %v730
        %s732 = sand.u32 %s187, 1
        %s733 = scalar_lea.sflag [#allocation4], %s732
        %s734 = sand.u32 %s187, 1
        %s735 = scalar_lea.vmem [#allocation3], %s734
        // Predicated region
        $region49: #{tpu_custom_call.1} parent=47 // pred_check
          %p736 = pneg %p197
        $region50: #{tpu_custom_call.1} parent=47 // pred_check_branch
          %738 = sbr.rel (%p736) target = $region52
        $region51: #{tpu_custom_call.1} parent=47 // pred_region
          %740 = vsyncadd %s733, 0
          %s741 = scalar_lea.hbm %s7, %s22
          %s743 = sshll.u32 %s735, 4
          %s744 = int_to_ptr.vmem [resolvable:$true] %s743
          %s745 = sshll.u32 %s741, 4
          %s746 = int_to_ptr.hbm [resolvable:$true] %s745
          %748 = dma.vmem_to_hbm [thread:$0]  %s744, 16, %s746, %s733
        $region52: #{tpu_custom_call.1} parent=47 // pred_fallthru
          _
      $region48: #{tpu_custom_call.1} parent=5 // pred_fallthru
        _
      %p749 = scmp.le.s32.totalorder 2, %s17
      // Predicated region
      $region53: #{tpu_custom_call.1} parent=5 // pred_check
        %p750 = pneg %p749
      $region54: #{tpu_custom_call.1} parent=5 // pred_check_branch
        %752 = sbr.rel (%p750) target = $region56
      $region55: #{tpu_custom_call.1} parent=5 // pred_region
        %s753 = ssub.s32 %s17, 2
        // Predicated region
        $region57: #{tpu_custom_call.1} parent=55 // pred_check
          %p754 = pneg %p203
        $region58: #{tpu_custom_call.1} parent=55 // pred_check_branch
          %756 = sbr.rel (%p754) target = $region60
        $region59: #{tpu_custom_call.1} parent=55 // pred_region
          %s757 = sand.u32 %s188, 1
          %s758 = scalar_lea.sflag [#allocation4], %s757
          %s759 = sand.u32 %s188, 1
          %s760 = scalar_lea.vmem [#allocation3], %s759
          %762 = dma.done %s758, 16
        $region60: #{tpu_custom_call.1} parent=55 // pred_fallthru
          _
      $region56: #{tpu_custom_call.1} parent=5 // pred_fallthru
        _
    $region6: #{tpu_custom_call.1} parent=1 // loop_footer
      %s21 = sadd.s32 1, %s17
    $region7: #{tpu_custom_call.1} parent=1 // loop_footer_branch
      %16 = sbr.rel target = $region3
    $region8: #{tpu_custom_call.1} parent=1 // loop_exit
      _
    %763 = vsyncpa [#allocation4], 1
    %s764 = scalar_lea.sflag [#allocation4], 1
    %765 = vsyncpa %s764, 1

</llo_original>
